<compile_context>
chip_gen: v7x
topology: tpu7x:2x2x1
jax: 0.10.0
libtpu: 0.0.40
codegen_flags: <defaults>
</compile_context>

<pallas_src>
import functools
import math

import jax
import jax.numpy as jnp
from jax import lax
from jax.experimental import pallas as pl
from jax.experimental.pallas import tpu as pltpu


# ---------------------------------------------------------------------------
# VMEM budget & tiling helpers
# ---------------------------------------------------------------------------
@functools.lru_cache(maxsize=None)
def _vmem_limit() -> int:
    """Generation-aware scoped-VMEM budget: ~75% of physical, clamped.
    v7x (64 MiB/TC) -> ~48 MiB; v5e/v6e (128 MiB) -> ~96 MiB."""
    try:
        cap = int(pltpu.get_tpu_info().vmem_capacity_bytes)
    except Exception:
        cap = 0
    if cap <= 0:
        cap = 64 * 1024 * 1024          # conservative fallback (v7x per-TC)
    return min(max(cap * 3 // 4, 32 * 1024 * 1024), 96 * 1024 * 1024)


def _pick_tile(n: int, target: int) -> int:
    """Largest tile <= target dividing n; prefer 128-, then 16-, then 8-aligned
    (bf16 sublane packing / lane density), else fall back to full length."""
    if n <= target:
        return n
    for align in (128, 16, 8):
        start = target - (target % align)
        for t in range(start, 0, -align):
            if n % t == 0:
                return t
    return n


# ---------------------------------------------------------------------------
# Stages 1 & 3: tiled linear layer  y = x @ W + b   (lane-dense output)
# ---------------------------------------------------------------------------
def _linear_kernel(x_ref, w_ref, b_ref, o_ref):
    # x block: (1, ts, Din); W: (Din, Dout) resident; b: (1, Dout) f32.
    acc = jnp.dot(x_ref[0], w_ref[...], preferred_element_type=jnp.float32)
    o_ref[0] = (acc + b_ref[...]).astype(o_ref.dtype)


def _linear_call(x, w_t, b2d, *, out_dtype, ts, single_buffer_weights):
    B, S, Din = x.shape
    Dout = w_t.shape[1]
    if single_buffer_weights:
        # Constant index map never re-DMAs, so the second pipeline buffer is
        # pure VMEM waste -> single-buffer the resident weight and bias.
        w_spec = pl.BlockSpec((Din, Dout), lambda b, s: (0, 0),
                              pipeline_mode=pl.Buffered(1))
        b_spec = pl.BlockSpec((1, Dout), lambda b, s: (0, 0),
                              pipeline_mode=pl.Buffered(1))
    else:
        w_spec = pl.BlockSpec((Din, Dout), lambda b, s: (0, 0))
        b_spec = pl.BlockSpec((1, Dout), lambda b, s: (0, 0))
    return pl.pallas_call(
        _linear_kernel,
        out_shape=jax.ShapeDtypeStruct((B, S, Dout), out_dtype),
        grid_spec=pltpu.PrefetchScalarGridSpec(
            num_scalar_prefetch=0,
            grid=(B, S // ts),
            in_specs=[pl.BlockSpec((1, ts, Din), lambda b, s: (b, s, 0)),
                      w_spec, b_spec],
            out_specs=pl.BlockSpec((1, ts, Dout), lambda b, s: (b, s, 0)),
        ),
        compiler_params=pltpu.CompilerParams(
            dimension_semantics=("parallel", "parallel"),
            vmem_limit_bytes=_vmem_limit()),
    )(x, w_t, b2d)


def _linear(x, w_t, b2d, *, out_dtype, seq_tile):
    ts = _pick_tile(x.shape[1], seq_tile)
    try:
        return _linear_call(x, w_t, b2d, out_dtype=out_dtype, ts=ts,
                            single_buffer_weights=True)
    except Exception:
        # pipeline_mode / Buffered(1) not supported on this jax version: fall
        # back to default double-buffering (correctness identical).
        return _linear_call(x, w_t, b2d, out_dtype=out_dtype, ts=ts,
                            single_buffer_weights=False)


# ---------------------------------------------------------------------------
# Stage 2: flash attention (shared online-softmax body, two grid variants)
# ---------------------------------------------------------------------------
def _read2d(ref, lead):
    return ref[(0,) * lead] if lead else ref[...]


def _store2d(ref, lead, val):
    if lead:
        ref[(0,) * lead] = val
    else:
        ref[...] = val


def _online_softmax_step(q_ref, k_ref, v_ref, m_sc, l_sc, acc_sc, *,
                         lead, mask_offsets=None, tq=None, tk=None):
    q = _read2d(q_ref, lead)                      # (tq, dh); scale pre-folded
    k = _read2d(k_ref, lead)                      # (tk, dh)
    v = _read2d(v_ref, lead)                      # (tk, dh)
    s = lax.dot_general(q, k, (((1,), (1,)), ((), ())),
                        preferred_element_type=jnp.float32)      # (tq, tk)
    if mask_offsets is not None:
        qi, kv = mask_offsets
        row = qi * tq + lax.broadcasted_iota(jnp.int32, (tq, tk), 0)
        col = kv * tk + lax.broadcasted_iota(jnp.int32, (tq, tk), 1)
        s = jnp.where(col > row, -jnp.inf, s)
    m_prev = m_sc[...]
    m_new = jnp.maximum(m_prev, jnp.max(s, axis=-1, keepdims=True))
    # kv tile 0 is always (at least partially) unmasked for every q row, so
    # m_new is finite before exp(m_prev - m_new) could otherwise produce NaN.
    alpha = jnp.exp(m_prev - m_new)
    p = jnp.exp(s - m_new)
    l_sc[...] = alpha * l_sc[...] + jnp.sum(p, axis=-1, keepdims=True)
    acc_sc[...] = alpha * acc_sc[...] + jnp.dot(
        p.astype(v.dtype), v, preferred_element_type=jnp.float32)
    m_sc[...] = m_new


def _finalize_out(o_ref, l_sc, acc_sc, *, lead, approx_recip):
    if approx_recip:
        out = acc_sc[...] * pl.reciprocal(l_sc[...], approx=True)  # EUP, ~free
    else:
        out = acc_sc[...] / l_sc[...]   # exact divide for the f32 check path
    _store2d(o_ref, lead, out.astype(o_ref.dtype))


def _flash_kernel(q_ref, k_ref, v_ref, o_ref, m_sc, l_sc, acc_sc, *,
                  lead, approx_recip):
    kv = pl.program_id(3)

    @pl.when(kv == 0)
    def _init():
        m_sc[...] = jnp.full_like(m_sc, -jnp.inf)
        l_sc[...] = jnp.zeros_like(l_sc)
        acc_sc[...] = jnp.zeros_like(acc_sc)

    _online_softmax_step(q_ref, k_ref, v_ref, m_sc, l_sc, acc_sc, lead=lead)

    @pl.when(kv == pl.num_programs(3) - 1)
    def _finalize():
        _finalize_out(o_ref, l_sc, acc_sc, lead=lead, approx_recip=approx_recip)


def _flash_kernel_causal(i_ref, j_ref, q_ref, k_ref, v_ref, o_ref,
                         m_sc, l_sc, acc_sc, *, lead, tq, tk, approx_recip):
    t = pl.program_id(2)
    qi = i_ref[t]
    kv = j_ref[t]

    @pl.when(kv == 0)
    def _init():
        m_sc[...] = jnp.full_like(m_sc, -jnp.inf)
        l_sc[...] = jnp.zeros_like(l_sc)
        acc_sc[...] = jnp.zeros_like(acc_sc)

    # Only the diagonal-straddling tile pays the iota/where masking work;
    # strictly-below-diagonal tiles run the unmasked update.
    straddles = kv * tk + (tk - 1) > qi * tq

    @pl.when(straddles)
    def _masked():
        _online_softmax_step(q_ref, k_ref, v_ref, m_sc, l_sc, acc_sc,
                             lead=lead, mask_offsets=(qi, kv), tq=tq, tk=tk)

    @pl.when(jnp.logical_not(straddles))
    def _unmasked():
        _online_softmax_step(q_ref, k_ref, v_ref, m_sc, l_sc, acc_sc, lead=lead)

    @pl.when(kv == (qi * tq + tq - 1) // tk)
    def _finalize():
        _finalize_out(o_ref, l_sc, acc_sc, lead=lead, approx_recip=approx_recip)


def _flash_attention(inputs, *, packed, n_heads, causal, q_tile, kv_tile,
                     approx_recip, out_dtype):
    H = n_heads
    if packed:
        B, S, three_d = inputs[0].shape
        dh = three_d // (3 * H)
        lead = 1
    else:
        B, _, S, dh = inputs[0].shape
        lead = 2
    tq = _pick_tile(S, q_tile)
    tk = _pick_tile(S, kv_tile)
    nq, nkv = S // tq, S // tk

    if packed:
        qb, kb, vb, ob = (1, tq, dh), (1, tk, dh), (1, tk, dh), (1, tq, dh)
        out_shape = jax.ShapeDtypeStruct((B, S, H * dh), out_dtype)
        if causal:
            maps = (lambda b, h, t, it, jt: (b, it[t], h),
                    lambda b, h, t, it, jt: (b, jt[t], H + h),
                    lambda b, h, t, it, jt: (b, jt[t], 2 * H + h),
                    lambda b, h, t, it, jt: (b, it[t], h))
        else:
            maps = (lambda b, h, i, j: (b, i, h),
                    lambda b, h, i, j: (b, j, H + h),
                    lambda b, h, i, j: (b, j, 2 * H + h),
                    lambda b, h, i, j: (b, i, h))
    else:
        qb, kb, vb, ob = ((1, 1, tq, dh), (1, 1, tk, dh),
                          (1, 1, tk, dh), (1, 1, tq, dh))
        out_shape = jax.ShapeDtypeStruct((B, H, S, dh), out_dtype)
        if causal:
            maps = (lambda b, h, t, it, jt: (b, h, it[t], 0),
                    lambda b, h, t, it, jt: (b, h, jt[t], 0),
                    lambda b, h, t, it, jt: (b, h, jt[t], 0),
                    lambda b, h, t, it, jt: (b, h, it[t], 0))
        else:
            maps = (lambda b, h, i, j: (b, h, i, 0),
                    lambda b, h, i, j: (b, h, j, 0),
                    lambda b, h, i, j: (b, h, j, 0),
                    lambda b, h, i, j: (b, h, i, 0))

    in_specs = [pl.BlockSpec(qb, maps[0]), pl.BlockSpec(kb, maps[1]),
                pl.BlockSpec(vb, maps[2])]
    out_specs = pl.BlockSpec(ob, maps[3])
    scratch = [pltpu.VMEM((tq, 1), jnp.float32),     # running max
               pltpu.VMEM((tq, 1), jnp.float32),     # running denominator
               pltpu.VMEM((tq, dh), jnp.float32)]    # output accumulator

    if causal:
        # Splash-style flattened triangular grid: only lower-triangular
        # (q_tile, kv_tile) pairs are enumerated -> above-diagonal tiles cost
        # neither DMA traffic nor grid-step overhead.
        pairs_i, pairs_j = [], []
        for i in range(nq):
            last = (i * tq + tq - 1) // tk
            for j in range(last + 1):
                pairs_i.append(i)
                pairs_j.append(j)
        i_of_t = jnp.asarray(pairs_i, dtype=jnp.int32)
        j_of_t = jnp.asarray(pairs_j, dtype=jnp.int32)
        kernel = functools.partial(_flash_kernel_causal, lead=lead, tq=tq,
                                   tk=tk, approx_recip=approx_recip)
        grid_spec = pltpu.PrefetchScalarGridSpec(
            num_scalar_prefetch=2, grid=(B, H, len(pairs_i)),
            in_specs=in_specs, out_specs=out_specs, scratch_shapes=scratch)
        dim_sem = ("parallel", "parallel", "arbitrary")
        args = (i_of_t, j_of_t) + tuple(inputs)
    else:
        kernel = functools.partial(_flash_kernel, lead=lead,
                                   approx_recip=approx_recip)
        grid_spec = pltpu.PrefetchScalarGridSpec(
            num_scalar_prefetch=0, grid=(B, H, nq, nkv),
            in_specs=in_specs, out_specs=out_specs, scratch_shapes=scratch)
        dim_sem = ("parallel", "parallel", "parallel", "arbitrary")
        args = tuple(inputs)

    return pl.pallas_call(
        kernel, out_shape=out_shape, grid_spec=grid_spec,
        compiler_params=pltpu.CompilerParams(
            dimension_semantics=dim_sem,
            vmem_limit_bytes=_vmem_limit()),
    )(*args)


# ---------------------------------------------------------------------------
# Public wrapper: full SelfAttentionBlock.forward
# ---------------------------------------------------------------------------
def self_attention_block(x, w_in, b_in, w_out, b_out, *, n_heads: int,
                         causal: bool = False,
                         compute_dtype=jnp.bfloat16,
                         seq_tile: int = 512, q_tile: int = 512,
                         kv_tile: int = 1024):
    """x: (B,S,D).  w_in: (3D,D), b_in: (3D,), w_out: (D,D), b_out: (D,)
    (PyTorch nn.Linear conventions).  Returns (B,S,D) in x.dtype."""
    B, S, D = x.shape
    assert D % n_heads == 0, "d_embed must be divisible by n_heads"
    dh = D // n_heads
    scale = 1.0 / math.sqrt(dh)

    # Trace-time weight prep: transpose to (in, out), fold 1/sqrt(d_head) into
    # the q columns (and bias), cast matmul operands; biases stay in f32.
    w_in_t = jnp.transpose(w_in).astype(jnp.float32)              # (D, 3D)
    w_in_t = jnp.concatenate([w_in_t[:, :D] * scale, w_in_t[:, D:]], axis=1)
    b_in_f = b_in.astype(jnp.float32)
    b_in_f = jnp.concatenate([b_in_f[:D] * scale, b_in_f[D:]])

    w_in_c = w_in_t.astype(compute_dtype)
    w_out_c = jnp.transpose(w_out).astype(compute_dtype)          # (D, D)
    b_in_2d = b_in_f.reshape(1, 3 * D)
    b_out_2d = b_out.astype(jnp.float32).reshape(1, D)
    x_c = x.astype(compute_dtype)
    approx_recip = jnp.dtype(compute_dtype) != jnp.dtype(jnp.float32)

    # 1) in_proj: lane-dense (B,S,3D), full-D contraction.
    qkv = _linear(x_c, w_in_c, b_in_2d, out_dtype=compute_dtype,
                  seq_tile=seq_tile)

    tq = _pick_tile(S, q_tile)
    tk = _pick_tile(S, kv_tile)
    packed_ok = (dh % 128 == 0) and (tq % 8 == 0 or tq == S) \
        and (tk % 8 == 0 or tk == S)

    if packed_ok:
        # Direct head-block indexing: no XLA head split/merge HBM passes and
        # lane-dense (unmasked) output stores.
        attn = _flash_attention((qkv, qkv, qkv), packed=True, n_heads=n_heads,
                                causal=causal, q_tile=q_tile, kv_tile=kv_tile,
                                approx_recip=approx_recip,
                                out_dtype=compute_dtype)           # (B,S,D)
    else:
        # dh not lane-aligned: explicit head split/merge (XLA layout plumbing,
        # ~4 extra HBM passes over the activations).
        q, k, v = jnp.split(qkv, 3, axis=-1)

        def to_heads(t):
            return t.reshape(B, S, n_heads, dh).transpose(0, 2, 1, 3)

        attn = _flash_attention((to_heads(q), to_heads(k), to_heads(v)),
                                packed=False, n_heads=n_heads, causal=causal,
                                q_tile=q_tile, kv_tile=kv_tile,
                                approx_recip=approx_recip,
                                out_dtype=compute_dtype)           # (B,H,S,dh)
        attn = attn.transpose(0, 2, 1, 3).reshape(B, S, D)

    # 3) single full-D out_proj matmul on the concatenated head outputs.
    return _linear(attn, w_out_c, b_out_2d, out_dtype=x.dtype,
                   seq_tile=seq_tile)


# ---------------------------------------------------------------------------
# Plain-JAX reference (mirrors the PyTorch forward) for verification
# ---------------------------------------------------------------------------
def _reference(x, w_in, b_in, w_out, b_out, *, n_heads, causal=False):
    B, S, D = x.shape
    dh = D // n_heads
    qkv = x @ w_in.T + b_in
    q, k, v = jnp.split(qkv, 3, axis=-1)

    def heads(t):
        return t.reshape(B, S, n_heads, dh).transpose(0, 2, 1, 3)

    q, k, v = heads(q), heads(k), heads(v)
    w = jnp.einsum("bhqd,bhkd->bhqk", q, k)
    if causal:
        row = jnp.arange(S)[:, None]
        col = jnp.arange(S)[None, :]
        w = jnp.where(col > row, -jnp.inf, w)
    w = w / math.sqrt(dh)
    w = jax.nn.softmax(w, axis=-1)
    o = jnp.einsum("bhqk,bhkd->bhqd", w, v)
    o = o.transpose(0, 2, 1, 3).reshape(B, S, D)
    return o @ w_out.T + b_out


if __name__ == "__main__":
    # --- small config (dh=8): exercises the heads-layout fallback path ------
    B, S, D, H = 2, 8, 32, 4
    key = jax.random.PRNGKey(0)
    kx, kwi, kbi, kwo, kbo = jax.random.split(key, 5)
    x = jax.random.normal(kx, (B, S, D), dtype=jnp.float32)
    # nn.Linear shapes: weight (out, in), bias (out,)
    w_in = jax.random.normal(kwi, (3 * D, D), dtype=jnp.float32) * 0.1
    b_in = jax.random.normal(kbi, (3 * D,), dtype=jnp.float32) * 0.1
    w_out = jax.random.normal(kwo, (D, D), dtype=jnp.float32) * 0.1
    b_out = jax.random.normal(kbo, (D,), dtype=jnp.float32) * 0.1

    ref = _reference(x, w_in, b_in, w_out, b_out, n_heads=H, causal=False)
    ref_c = _reference(x, w_in, b_in, w_out, b_out, n_heads=H, causal=True)

    out_f32 = jax.block_until_ready(self_attention_block(
        x, w_in, b_in, w_out, b_out, n_heads=H, causal=False,
        compute_dtype=jnp.float32))
    assert out_f32.shape == (B, S, D)
    assert jnp.allclose(out_f32, ref, rtol=2e-3, atol=2e-3), "f32 mismatch"

    out_bf16 = jax.block_until_ready(self_attention_block(
        x, w_in, b_in, w_out, b_out, n_heads=H, causal=False))
    assert jnp.allclose(out_bf16, ref, rtol=5e-2, atol=5e-2), "bf16 mismatch"

    out_c = jax.block_until_ready(self_attention_block(
        x, w_in, b_in, w_out, b_out, n_heads=H, causal=True))
    assert jnp.allclose(out_c, ref_c, rtol=5e-2, atol=5e-2), "causal mismatch"

    # --- lane-aligned config (dh=128): exercises the packed direct path -----
    B2, S2, D2, H2 = 1, 256, 256, 2
    k2 = jax.random.split(jax.random.PRNGKey(0), 5)
    x2 = jax.random.normal(k2[0], (B2, S2, D2), dtype=jnp.float32)
    w_in2 = jax.random.normal(k2[1], (3 * D2, D2), dtype=jnp.float32) * 0.05
    b_in2 = jax.random.normal(k2[2], (3 * D2,), dtype=jnp.float32) * 0.05
    w_out2 = jax.random.normal(k2[3], (D2, D2), dtype=jnp.float32) * 0.05
    b_out2 = jax.random.normal(k2[4], (D2,), dtype=jnp.float32) * 0.05

    ref2 = _reference(x2, w_in2, b_in2, w_out2, b_out2, n_heads=H2, causal=False)
    ref2c = _reference(x2, w_in2, b_in2, w_out2, b_out2, n_heads=H2, causal=True)

    # small tiles on purpose: exercise multi-kv online softmax in the packed
    # path and the multi-tile triangular causal grid.
    out2 = jax.block_until_ready(self_attention_block(
        x2, w_in2, b_in2, w_out2, b_out2, n_heads=H2, causal=False,
        compute_dtype=jnp.float32, q_tile=128, kv_tile=64))
    assert jnp.allclose(out2, ref2, rtol=2e-3, atol=2e-3), "packed mismatch"

    out2c = jax.block_until_ready(self_attention_block(
        x2, w_in2, b_in2, w_out2, b_out2, n_heads=H2, causal=True,
        compute_dtype=jnp.float32, q_tile=64, kv_tile=64))
    assert jnp.allclose(out2c, ref2c, rtol=2e-3, atol=2e-3), \
        "packed causal mismatch"

    print("KERNEL_OK")
</pallas_src>

<mosaic_0001>
module attributes {stable_mosaic.version = 11 : i64} {
  func.func @_linear_kernel(%arg0: i32, %arg1: i32, %arg2: memref<1x8x32xf32, #tpu.memory_space<vmem>>, %arg3: memref<32x96xf32, #tpu.memory_space<vmem>>, %arg4: memref<1x96xf32, #tpu.memory_space<vmem>>, %arg5: memref<1x8x96xf32, #tpu.memory_space<vmem>>) attributes {dimension_semantics = [#tpu.dimension_semantics<parallel>, #tpu.dimension_semantics<parallel>], iteration_bounds = array<i64: 2, 1>, scalar_prefetch = 0 : i64, scratch_operands = 0 : i64, tpu.core_type = #tpu.core_type<tc>, window_params = [{transform_indices = @transform_0, window_bounds = array<i64: 1, 8, 32>}, {pipeline_mode = #tpu.pipeline_mode<synchronous>, transform_indices = @transform_1, window_bounds = array<i64: 32, 96>}, {pipeline_mode = #tpu.pipeline_mode<synchronous>, transform_indices = @transform_2, window_bounds = array<i64: 1, 96>}, {transform_indices = @transform_3, window_bounds = array<i64: 1, 8, 96>}]} {
    %c0 = arith.constant 0 : index
    %c0_0 = arith.constant 0 : index
    %c0_1 = arith.constant 0 : index
    %0 = vector.load %arg2[%c0, %c0_0, %c0_1] : memref<1x8x32xf32, #tpu.memory_space<vmem>>, vector<1x8x32xf32>
    %1 = vector.shape_cast %0 : vector<1x8x32xf32> to vector<8x32xf32>
    %c0_2 = arith.constant 0 : index
    %c0_3 = arith.constant 0 : index
    %2 = vector.load %arg3[%c0_2, %c0_3] : memref<32x96xf32, #tpu.memory_space<vmem>>, vector<32x96xf32>
    %cst = arith.constant dense<0.000000e+00> : vector<8x96xf32>
    %3 = tpu.matmul %1, %2, %cst {dimension_numbers = #tpu.dot_dimension_numbers<[1], [0], [0], [1], [0, 0, 1, 1], [], []>} : vector<8x32xf32>, vector<32x96xf32>, vector<8x96xf32> -> vector<8x96xf32>
    %c0_4 = arith.constant 0 : index
    %c0_5 = arith.constant 0 : index
    %4 = vector.load %arg4[%c0_4, %c0_5] : memref<1x96xf32, #tpu.memory_space<vmem>>, vector<1x96xf32>
    %5 = vector.broadcast %4 : vector<1x96xf32> to vector<8x96xf32>
    %6 = arith.addf %3, %5 : vector<8x96xf32>
    %c0_6 = arith.constant 0 : index
    %c0_7 = arith.constant 0 : index
    %c0_8 = arith.constant 0 : index
    %7 = vector.load %arg5[%c0_6, %c0_7, %c0_8] : memref<1x8x96xf32, #tpu.memory_space<vmem>>, vector<1x8x96xf32>
    %8 = vector.shape_cast %7 : vector<1x8x96xf32> to vector<8x96xf32>
    %9 = vector.shape_cast %6 : vector<8x96xf32> to vector<1x8x96xf32>
    tpu.vector_store %arg5[%c0_6, %c0_7, %c0_8], %9 {strides = array<i32>} : memref<1x8x96xf32, #tpu.memory_space<vmem>>, vector<1x8x96xf32>,
    return
  }
  func.func @transform_0(%arg0: i32, %arg1: i32) -> (i32, i32, i32) {
    %c0_i32 = arith.constant 0 : i32
    %c0_i32_0 = arith.constant 0 : i32
    return %arg0, %arg1, %c0_i32 : i32, i32, i32
  }
  func.func @transform_1(%arg0: i32, %arg1: i32) -> (i32, i32) {
    %c0_i32 = arith.constant 0 : i32
    %c0_i32_0 = arith.constant 0 : i32
    %c0_i32_1 = arith.constant 0 : i32
    return %c0_i32, %c0_i32_0 : i32, i32
  }
  func.func @transform_2(%arg0: i32, %arg1: i32) -> (i32, i32) {
    %c0_i32 = arith.constant 0 : i32
    %c0_i32_0 = arith.constant 0 : i32
    %c0_i32_1 = arith.constant 0 : i32
    return %c0_i32, %c0_i32_0 : i32, i32
  }
  func.func @transform_3(%arg0: i32, %arg1: i32) -> (i32, i32, i32) {
    %c0_i32 = arith.constant 0 : i32
    %c0_i32_0 = arith.constant 0 : i32
    return %arg0, %arg1, %c0_i32 : i32, i32, i32
  }
}

module attributes {stable_mosaic.version = 11 : i64} {
  func.func @_linear_kernel(%arg0: i32, %arg1: i32, %arg2: memref<1x8x32xf32, #tpu.memory_space<vmem>>, %arg3: memref<32x96xf32, #tpu.memory_space<vmem>>, %arg4: memref<1x96xf32, #tpu.memory_space<vmem>>, %arg5: memref<1x8x96xf32, #tpu.memory_space<vmem>>) attributes {dimension_semantics = [#tpu.dimension_semantics<parallel>, #tpu.dimension_semantics<parallel>], iteration_bounds = array<i64: 2, 1>, scalar_prefetch = 0 : i64, scratch_operands = 0 : i64, tpu.core_type = #tpu.core_type<tc>, window_params = [{transform_indices = @transform_0, window_bounds = array<i64: 1, 8, 32>}, {pipeline_mode = #tpu.pipeline_mode<synchronous>, transform_indices = @transform_1, window_bounds = array<i64: 32, 96>}, {pipeline_mode = #tpu.pipeline_mode<synchronous>, transform_indices = @transform_2, window_bounds = array<i64: 1, 96>}, {transform_indices = @transform_3, window_bounds = array<i64: 1, 8, 96>}]} {
    %c0 = arith.constant 0 : index
    %c0_0 = arith.constant 0 : index
    %c0_1 = arith.constant 0 : index
    %0 = vector.load %arg2[%c0, %c0_0, %c0_1] : memref<1x8x32xf32, #tpu.memory_space<vmem>>, vector<1x8x32xf32>
    %1 = vector.shape_cast %0 : vector<1x8x32xf32> to vector<8x32xf32>
    %c0_2 = arith.constant 0 : index
    %c0_3 = arith.constant 0 : index
    %2 = vector.load %arg3[%c0_2, %c0_3] : memref<32x96xf32, #tpu.memory_space<vmem>>, vector<32x96xf32>
    %cst = arith.constant dense<0.000000e+00> : vector<8x96xf32>
    %3 = tpu.matmul %1, %2, %cst {dimension_numbers = #tpu.dot_dimension_numbers<[1], [0], [0], [1], [0, 0, 1, 1], [], []>} : vector<8x32xf32>, vector<32x96xf32>, vector<8x96xf32> -> vector<8x96xf32>
    %c0_4 = arith.constant 0 : index
    %c0_5 = arith.constant 0 : index
    %4 = vector.load %arg4[%c0_4, %c0_5] : memref<1x96xf32, #tpu.memory_space<vmem>>, vector<1x96xf32>
    %5 = vector.broadcast %4 : vector<1x96xf32> to vector<8x96xf32>
    %6 = arith.addf %3, %5 : vector<8x96xf32>
    %c0_6 = arith.constant 0 : index
    %c0_7 = arith.constant 0 : index
    %c0_8 = arith.constant 0 : index
    %7 = vector.load %arg5[%c0_6, %c0_7, %c0_8] : memref<1x8x96xf32, #tpu.memory_space<vmem>>, vector<1x8x96xf32>
    %8 = vector.shape_cast %7 : vector<1x8x96xf32> to vector<8x96xf32>
    %9 = vector.shape_cast %6 : vector<8x96xf32> to vector<1x8x96xf32>
    tpu.vector_store %arg5[%c0_6, %c0_7, %c0_8], %9 {strides = array<i32>} : memref<1x8x96xf32, #tpu.memory_space<vmem>>, vector<1x8x96xf32>,
    return
  }
  func.func @transform_0(%arg0: i32, %arg1: i32) -> (i32, i32, i32) {
    %c0_i32 = arith.constant 0 : i32
    %c0_i32_0 = arith.constant 0 : i32
    return %arg0, %arg1, %c0_i32 : i32, i32, i32
  }
  func.func @transform_1(%arg0: i32, %arg1: i32) -> (i32, i32) {
    %c0_i32 = arith.constant 0 : i32
    %c0_i32_0 = arith.constant 0 : i32
    %c0_i32_1 = arith.constant 0 : i32
    return %c0_i32, %c0_i32_0 : i32, i32
  }
  func.func @transform_2(%arg0: i32, %arg1: i32) -> (i32, i32) {
    %c0_i32 = arith.constant 0 : i32
    %c0_i32_0 = arith.constant 0 : i32
    %c0_i32_1 = arith.constant 0 : i32
    return %c0_i32, %c0_i32_0 : i32, i32
  }
  func.func @transform_3(%arg0: i32, %arg1: i32) -> (i32, i32, i32) {
    %c0_i32 = arith.constant 0 : i32
    %c0_i32_0 = arith.constant 0 : i32
    return %arg0, %arg1, %c0_i32 : i32, i32, i32
  }
}

</mosaic_0001>

<llo_original>
// kernel: tpu_custom_call.1
$region0: #{tpu_custom_call.1}
  #allocation0 [shape = 'u32[]', space=smem, size = 0x4, offset = 0x4, fixed_abs, tag = 'smem constant byte address 0x4 - core index']
  #allocation1 [shape = 'u32[144,128]{1,0:T(1,128)}', space=vmem, size = 0x12000, scoped, tag = 'internal scratch']
  %s0 = inlined_call_operand.hbm [shape: f32[2,8,32], index: 0, kind: input, shape index: {}]
  %s1 = inlined_call_operand.hbm [shape: f32[32,96], index: 1, kind: input, shape index: {}]
  %s2 = inlined_call_operand.vmem [shape: f32[1,96], index: 2, kind: input, shape index: {}]
  %s3 = inlined_call_operand.hbm [shape: f32[2,8,96], index: 3, kind: output, shape index: {}]
  %s4 = sld [smem:[#allocation0]]
  $region53: #{tpu_custom_call.1} parent=0
    _
  %s6 = ssub.s32 1, %s4
  %s7 = scalar_select 0, %s6, %s4
  $region1: #{tpu_custom_call.1} parent=0
    #allocation2 [shape = 'u8[8192]{0}', space=vmem, size = 0x2000, scoped, tag = 'input window, operand 0']
    #allocation3 [shape = 's32[2]{0}', space=sflag, size = 0x8, scoped, tag = 'scoped memory for tpu_custom_call.1']
    #allocation4 [shape = 's32[2]{0}', space=sflag, size = 0x8, scoped, tag = 'scoped memory for tpu_custom_call.1']
    #allocation5 [shape = 'u8[16384]{0}', space=vmem, size = 0x4000, scoped, tag = 'input window, operand 1, single buffered']
    #allocation6 [shape = 's32[1]{0}', space=sflag, size = 0x4, scoped, tag = 'scoped memory for tpu_custom_call.1']
    #allocation7 [shape = 'u8[8192]{0}', space=vmem, size = 0x2000, scoped, tag = 'output window, operand 0']
    %8 = vsyncpa [#allocation3], 0
    %s9 = scalar_lea.sflag [#allocation3], 1
    %10 = vsyncpa %s9, 0
    %11 = vsyncpa [#allocation6], 0
    %12 = vsyncpa [#allocation4], 0
    %s13 = scalar_lea.sflag [#allocation4], 1
    %14 = vsyncpa %s13, 0
    loop: start=0, step=1, limit=4
    $region2: #{tpu_custom_call.1} parent=1 // loop_pre_header
      _
    $region3: #{tpu_custom_call.1} parent=1 // loop_header
      %s16 = sphi 0, %s20
      %p17 = scmp.ge.s32.totalorder %s16, 4
      %s23 = sphi 0, %s35
      %s24 = sphi 0, %s31
      %s25 = sphi 0, %s23
      %s26 = sphi 0, %s24
      %s27 = sphi 0, %s25
      %s28 = sphi 0, %s26
      %s40 = sphi 0, %s42
      %s43 = sphi 0, %s40
      %s44 = sphi 0, %s43
      %s60 = sphi 0, %s44
      %s64 = sphi 0, %s64
      %s66 = sphi 0, %s64
      %s67 = sphi 0, %s66
      %s81 = sphi 0, %s67
      %s85 = sphi 0, %s85
      %s87 = sphi 0, %s85
      %s88 = sphi 0, %s87
      %s102 = sphi 0, %s88
      %s110 = sphi 0, %s112
      %s113 = sphi 0, %s110
      %s114 = sphi 0, %s113
      %s130 = sphi 0, %s114
    $region4: #{tpu_custom_call.1} parent=1 // loop_header_branch
      %19 = sbr.rel (%p17) target = $region8
    $region5: #{tpu_custom_call.1} parent=1 // loop_body
      %s21 = ssub.s32 %s16, 1
      %s22 = ssub.s32 %s16, 2
      %s29 = sadd.s32 1, %s24
      %p30 = scmp.ge.s32.totalorder %s29, 1
      %s31 = scalar_select %p30, 0, %s29
      %s32 = sadd.s32 1, %s23
      %s33 = scalar_select %p30, %s32, %s23
      %p34 = scmp.ge.s32.totalorder %s33, 2
      %s35 = scalar_select %p34, 0, %s33
      %s36 = ssub.s32 %s23, %s35
      %s37 = ssub.s32 %s24, %s31
      %s38 = sor.u32 %s36, %s37
      %p39 = scmp.eq.s32.totalorder %s38, 0
      %s41 = sadd.s32 %s40, 1
      %s42 = scalar_select %p39, %s40, %s41
      %p45 = pneg %p39
      %p46 = scmp.eq.s32.totalorder %s16, 1
      %p47 = por %p45, %p46
      %p48 = scmp.ne.s32.totalorder %s40, %s43
      %p49 = scmp.eq.s32.totalorder %s16, 0
      %p50 = por %p48, %p49
      %p51 = scmp.ne.s32.totalorder %s40, %s43
      %p52 = scmp.eq.s32.totalorder %s21, 1
      %p53 = por %p51, %p52
      %p54 = scmp.ne.s32.totalorder %s43, %s44
      %p55 = scmp.eq.s32.totalorder %s21, 0
      %p56 = por %p54, %p55
      %p57 = scmp.ne.s32.totalorder %s43, %s44
      %p58 = scmp.eq.s32.totalorder %s22, 1
      %p59 = por %p57, %p58
      %p61 = scmp.ne.s32.totalorder %s44, %s60
      %p62 = scmp.eq.s32.totalorder %s22, 0
      %p63 = por %p61, %p62
      %s65 = sadd.s32 %s64, 1
      %p68 = scmp.eq.s32.totalorder %s16, 1
      %p69 = scmp.ne.s32.totalorder %s64, %s66
      %p70 = scmp.eq.s32.totalorder %s16, 0
      %p71 = por %p69, %p70
      %p72 = scmp.ne.s32.totalorder %s64, %s66
      %p73 = scmp.eq.s32.totalorder %s21, 1
      %p74 = por %p72, %p73
      %p75 = scmp.ne.s32.totalorder %s66, %s67
      %p76 = scmp.eq.s32.totalorder %s21, 0
      %p77 = por %p75, %p76
      %p78 = scmp.ne.s32.totalorder %s66, %s67
      %p79 = scmp.eq.s32.totalorder %s22, 1
      %p80 = por %p78, %p79
      %p82 = scmp.ne.s32.totalorder %s67, %s81
      %p83 = scmp.eq.s32.totalorder %s22, 0
      %p84 = por %p82, %p83
      %s86 = sadd.s32 %s85, 1
      %p89 = scmp.eq.s32.totalorder %s16, 1
      %p90 = scmp.ne.s32.totalorder %s85, %s87
      %p91 = scmp.eq.s32.totalorder %s16, 0
      %p92 = por %p90, %p91
      %p93 = scmp.ne.s32.totalorder %s85, %s87
      %p94 = scmp.eq.s32.totalorder %s21, 1
      %p95 = por %p93, %p94
      %p96 = scmp.ne.s32.totalorder %s87, %s88
      %p97 = scmp.eq.s32.totalorder %s21, 0
      %p98 = por %p96, %p97
      %p99 = scmp.ne.s32.totalorder %s87, %s88
      %p100 = scmp.eq.s32.totalorder %s22, 1
      %p101 = por %p99, %p100
      %p103 = scmp.ne.s32.totalorder %s88, %s102
      %p104 = scmp.eq.s32.totalorder %s22, 0
      %p105 = por %p103, %p104
      %s106 = ssub.s32 %s23, %s35
      %s107 = ssub.s32 %s24, %s31
      %s108 = sor.u32 %s106, %s107
      %p109 = scmp.eq.s32.totalorder %s108, 0
      %s111 = sadd.s32 %s110, 1
      %s112 = scalar_select %p109, %s110, %s111
      %p115 = pneg %p109
      %p116 = scmp.eq.s32.totalorder %s16, 1
      %p117 = por %p115, %p116
      %p118 = scmp.ne.s32.totalorder %s110, %s113
      %p119 = scmp.eq.s32.totalorder %s16, 0
      %p120 = por %p118, %p119
      %p121 = scmp.ne.s32.totalorder %s110, %s113
      %p122 = scmp.eq.s32.totalorder %s21, 1
      %p123 = por %p121, %p122
      %p124 = scmp.ne.s32.totalorder %s113, %s114
      %p125 = scmp.eq.s32.totalorder %s21, 0
      %p126 = por %p124, %p125
      %p127 = scmp.ne.s32.totalorder %s113, %s114
      %p128 = scmp.eq.s32.totalorder %s22, 1
      %p129 = por %p127, %p128
      %p131 = scmp.ne.s32.totalorder %s114, %s130
      %p132 = scmp.eq.s32.totalorder %s22, 0
      %p133 = por %p131, %p132
      %p134 = scmp.le.s32.totalorder 1, %s16
      %p135 = scmp.lt.s32.totalorder %s16, 3
      %p136 = pnand %p134, %p135
      %p137 = pneg %p136
      // Predicated region
      $region9: #{tpu_custom_call.1} parent=5 // pred_check
        _
      $region10: #{tpu_custom_call.1} parent=5 // pred_check_branch
        %139 = sbr.rel (%p136) target = $region12
      $region11: #{tpu_custom_call.1} parent=5 // pred_region
        %s140 = ssub.s32 %s16, 1
        // Predicated region
        $region13: #{tpu_custom_call.1} parent=11 // pred_check
          %p141 = pneg %p77
        $region14: #{tpu_custom_call.1} parent=11 // pred_check_branch
          %143 = sbr.rel (%p141) target = $region16
        $region15: #{tpu_custom_call.1} parent=11 // pred_region
          %s145 = ssub.s32 512, 512
          %146 = vsyncadd [#allocation6], %s145
          %s147 = sshll.u32 [#allocation5], 4
          %s148 = int_to_ptr.vmem [resolvable:$true] %s147
          %153 = dma.hbm_to_vmem [thread:$0]  %s1, 512, %s148, [#allocation6], 128, 128, 8
        $region16: #{tpu_custom_call.1} parent=11 // pred_fallthru
          _
        // Predicated region
        $region17: #{tpu_custom_call.1} parent=11 // pred_check
          %p154 = pneg %p98
        $region18: #{tpu_custom_call.1} parent=11 // pred_check_branch
          %156 = sbr.rel (%p154) target = $region20
        $region19: #{tpu_custom_call.1} parent=11 // pred_region
          _
        $region20: #{tpu_custom_call.1} parent=11 // pred_fallthru
          _
      $region12: #{tpu_custom_call.1} parent=5 // pred_fallthru
        _
      %p157 = scmp.lt.s32.totalorder %s16, 2
      // Predicated region
      $region21: #{tpu_custom_call.1} parent=5 // pred_check
        %p158 = pneg %p157
      $region22: #{tpu_custom_call.1} parent=5 // pred_check_branch
        %160 = sbr.rel (%p158) target = $region24
      $region23: #{tpu_custom_call.1} parent=5 // pred_region
        // Predicated region
        $region25: #{tpu_custom_call.1} parent=23 // pred_check
          %p161 = pneg %p50
        $region26: #{tpu_custom_call.1} parent=23 // pred_check_branch
          %163 = sbr.rel (%p161) target = $region28
        $region27: #{tpu_custom_call.1} parent=23 // pred_region
          %s164 = sand.u32 %s40, 1
          %s165 = scalar_lea.sflag [#allocation3], %s164
          %s166 = sand.u32 %s40, 1
          %s167 = smul.addr %s166, 8
          %s168 = scalar_lea.vmem [#allocation2], %s167
          %s170 = ssub.s32 128, 128
          %171 = vsyncadd %s165, %s170
          %s172 = sadd.s32 %s24, %s23
          %s173 = smul.addr %s172, 128
          %s174 = scalar_lea.hbm %s0, %s173
          %s176 = sshll.u32 %s168, 4
          %s177 = int_to_ptr.vmem [resolvable:$true] %s176
          %179 = dma.hbm_to_vmem [thread:$0]  %s174, 128, %s177, %s165
        $region28: #{tpu_custom_call.1} parent=23 // pred_fallthru
          _
      $region24: #{tpu_custom_call.1} parent=5 // pred_fallthru
        _
      %p180 = scmp.le.s32.totalorder 1, %s16
      %p181 = scmp.lt.s32.totalorder %s16, 3
      %p182 = pnand %p180, %p181
      %p183 = pneg %p182
      // Predicated region
      $region29: #{tpu_custom_call.1} parent=5 // pred_check
        _
      $region30: #{tpu_custom_call.1} parent=5 // pred_check_branch
        %185 = sbr.rel (%p182) target = $region32
      $region31: #{tpu_custom_call.1} parent=5 // pred_region
        %s186 = ssub.s32 %s16, 1
        %s187 = sand.u32 %s43, 1
        %s188 = scalar_lea.sflag [#allocation3], %s187
        %s189 = sand.u32 %s43, 1
        %s190 = smul.addr %s189, 8
        %s191 = scalar_lea.vmem [#allocation2], %s190
        // Predicated region
        $region33: #{tpu_custom_call.1} parent=31 // pred_check
          %p192 = pneg %p56
        $region34: #{tpu_custom_call.1} parent=31 // pred_check_branch
          %194 = sbr.rel (%p192) target = $region36
        $region35: #{tpu_custom_call.1} parent=31 // pred_region
          %195 = dma.done %s188, 128
        $region36: #{tpu_custom_call.1} parent=31 // pred_fallthru
          _
        // Predicated region
        $region37: #{tpu_custom_call.1} parent=31 // pred_check
          %p196 = pneg %p77
        $region38: #{tpu_custom_call.1} parent=31 // pred_check_branch
          %198 = sbr.rel (%p196) target = $region40
        $region39: #{tpu_custom_call.1} parent=31 // pred_region
          %199 = dma.done [#allocation6], 512
        $region40: #{tpu_custom_call.1} parent=31 // pred_fallthru
          _
        %s200 = sand.u32 %s43, 1
        %s201 = scalar_lea.sflag [#allocation3], %s200
        %s202 = sand.u32 %s43, 1
        %s203 = smul.addr %s202, 8
        %s204 = scalar_lea.vmem [#allocation2], %s203
        %p205 = pneg %p56
        %p206 = pneg %p53
        %p207 = pneg %p77
        %p208 = pneg %p74
        %p209 = pneg %p98
        %p210 = pneg %p95
        %p211 = pneg %p126
        %p212 = pneg %p123
        %s213 = sand.u32 %s113, 1
        %s214 = scalar_lea.sflag [#allocation4], %s213
        %s215 = sand.u32 %s113, 1
        %s216 = smul.addr %s215, 8
        %s217 = scalar_lea.vmem [#allocation7], %s216
        %v218 = vld [vmem:[%s191] sm:$0xff]
        %v219 = vld [vmem:[#allocation5] sm:$0xff]
        %v220 = vld [vmem:[#allocation5 + $0x8] sm:$0xff]
        %v221 = vld [vmem:[#allocation5 + $0x10] sm:$0xff]
        %v222 = vld [vmem:[#allocation5 + $0x18] sm:$0xff]
        %v223 = vld [vmem:[%s2] sm:$0x1]
        %v225 = vlaneseq
        %v226 = vshrl.u32 %v225, 7
        %v227 = vsub.s32 0, %v226
        %v228 = vrot.slane %v223, %v227
        %vm230 = vcmask 261120
        %v232 = vsel %vm230, %v218, 0
        %234 = vmatprep.subr.mxu0 0.0
        %235 = vmatpush1.msra.mxu0 %v219
        %236 = vmatprep.subr.mxu0 0.0
        %237 = vmatpush1.msra.mxu0 %v220
        %238 = vmatprep.subr.mxu0 0.0
        %239 = vmatpush1.msra.mxu0 %v221
        %240 = vmatprep.subr.mxu0 0.0
        %241 = vmatpush1.msra.mxu0 %v222
        %242 = vmatprep.subr.mxu0 0.0
        %243 = vmatpush1.msra.mxu0 0.0
        %244 = vmatprep.subr.mxu0 0.0
        %245 = vmatpush1.msra.mxu0 0.0
        %246 = vmatprep.subr.mxu0 0.0
        %247 = vmatpush1.msra.mxu0 0.0
        %248 = vmatprep.subr.mxu0 0.0
        %249 = vmatpush1.msra.mxu0 0.0
        %250 = vmatprep.subr.mxu0 0.0
        %251 = vmatpush1.msra.mxu0 0.0
        %252 = vmatprep.subr.mxu0 0.0
        %253 = vmatpush1.msra.mxu0 0.0
        %254 = vmatprep.subr.mxu0 0.0
        %255 = vmatpush1.msra.mxu0 0.0
        %256 = vmatprep.subr.mxu0 0.0
        %257 = vmatpush1.msra.mxu0 0.0
        %258 = vmatprep.subr.mxu0 0.0
        %259 = vmatpush1.msra.mxu0 0.0
        %260 = vmatprep.subr.mxu0 0.0
        %261 = vmatpush1.msra.mxu0 0.0
        %262 = vmatprep.subr.mxu0 0.0
        %263 = vmatpush1.msra.mxu0 0.0
        %264 = vmatprep.subr.mxu0 0.0
        %265 = vmatpush1.msra.mxu0 0.0
        %266 = vmatprep.subr.mxu0 0.0
        %267 = vmatpush1.msra.mxu0 0.0
        %268 = vmatprep.subr.mxu0 0.0
        %269 = vmatpush1.msra.mxu0 0.0
        %270 = vmatprep.subr.mxu0 0.0
        %271 = vmatpush1.msra.mxu0 0.0
        %272 = vmatprep.subr.mxu0 0.0
        %273 = vmatpush1.msra.mxu0 0.0
        %274 = vmatprep.subr.mxu0 0.0
        %275 = vmatpush1.msra.mxu0 0.0
        %276 = vmatprep.subr.mxu0 0.0
        %277 = vmatpush1.msra.mxu0 0.0
        %278 = vmatprep.subr.mxu0 0.0
        %279 = vmatpush1.msra.mxu0 0.0
        %280 = vmatprep.subr.mxu0 0.0
        %281 = vmatpush1.msra.mxu0 0.0
        %282 = vmatprep.subr.mxu0 0.0
        %283 = vmatpush1.msra.mxu0 0.0
        %284 = vmatprep.subr.mxu0 0.0
        %285 = vmatpush1.msra.mxu0 0.0
        %286 = vmatprep.subr.mxu0 0.0
        %287 = vmatpush1.msra.mxu0 0.0
        %288 = vmatprep.subr.mxu0 0.0
        %289 = vmatpush1.msra.mxu0 0.0
        %290 = vmatprep.subr.mxu0 0.0
        %291 = vmatpush1.msra.mxu0 0.0
        %292 = vmatprep.subr.mxu0 0.0
        %293 = vmatpush1.msra.mxu0 0.0
        %294 = vmatprep.subr.mxu0 0.0
        %295 = vmatpush1.msra.mxu0 0.0
        %296 = vmatprep.subr.mxu0 0.0
        %297 = vmatpush1.msra.mxu0 0.0
        %298 = vmatprep.mubr.f32.mxu0 0.0
        %299 = vmatmul.mubr.f32.gmra.mrb[0].mxu0 %v232
        %v300 = vpop.f32.mrb[0].mxu0
        %v301 = vadd.f32 %v228, %v300
        %v302 = vpop.f32.mrb[0].mxu0
        %303 = vdwg.mxu0
        %vm304 = vcmask 785408
        %305 = vst.msk [vmem:[%s217] sm:$0xff] %vm304, %v301
        %s306 = sand.u32 %s113, 1
        %s307 = scalar_lea.sflag [#allocation4], %s306
        %s308 = sand.u32 %s113, 1
        %s309 = smul.addr %s308, 8
        %s310 = scalar_lea.vmem [#allocation7], %s309
        // Predicated region
        $region41: #{tpu_custom_call.1} parent=31 // pred_check
          %p311 = pneg %p123
        $region42: #{tpu_custom_call.1} parent=31 // pred_check_branch
          %313 = sbr.rel (%p311) target = $region44
        $region43: #{tpu_custom_call.1} parent=31 // pred_region
          %s315 = ssub.s32 128, 128
          %316 = vsyncadd %s307, %s315
          %s317 = sadd.s32 %s26, %s25
          %s318 = smul.addr %s317, 128
          %s319 = scalar_lea.hbm %s3, %s318
          %s321 = sshll.u32 %s310, 4
          %s322 = int_to_ptr.vmem [resolvable:$true] %s321
          %324 = dma.vmem_to_hbm [thread:$0]  %s322, 128, %s319, %s307
        $region44: #{tpu_custom_call.1} parent=31 // pred_fallthru
          _
      $region32: #{tpu_custom_call.1} parent=5 // pred_fallthru
        _
      %p325 = scmp.le.s32.totalorder 2, %s16
      // Predicated region
      $region45: #{tpu_custom_call.1} parent=5 // pred_check
        %p326 = pneg %p325
      $region46: #{tpu_custom_call.1} parent=5 // pred_check_branch
        %328 = sbr.rel (%p326) target = $region48
      $region47: #{tpu_custom_call.1} parent=5 // pred_region
        %s329 = ssub.s32 %s16, 2
        // Predicated region
        $region49: #{tpu_custom_call.1} parent=47 // pred_check
          %p330 = pneg %p129
        $region50: #{tpu_custom_call.1} parent=47 // pred_check_branch
          %332 = sbr.rel (%p330) target = $region52
        $region51: #{tpu_custom_call.1} parent=47 // pred_region
          %s333 = sand.u32 %s114, 1
          %s334 = scalar_lea.sflag [#allocation4], %s333
          %s335 = sand.u32 %s114, 1
          %s336 = smul.addr %s335, 8
          %s337 = scalar_lea.vmem [#allocation7], %s336
          %338 = dma.done %s334, 128
        $region52: #{tpu_custom_call.1} parent=47 // pred_fallthru
          _
      $region48: #{tpu_custom_call.1} parent=5 // pred_fallthru
        _
    $region6: #{tpu_custom_call.1} parent=1 // loop_footer
      %s20 = sadd.s32 1, %s16
    $region7: #{tpu_custom_call.1} parent=1 // loop_footer_branch
      %15 = sbr.rel target = $region3
    $region8: #{tpu_custom_call.1} parent=1 // loop_exit
      _
    %339 = vsyncpa [#allocation3], 1
    %s340 = scalar_lea.sflag [#allocation3], 1
    %341 = vsyncpa %s340, 1
    %342 = vsyncpa [#allocation6], 1
    %343 = vsyncpa [#allocation4], 1
    %s344 = scalar_lea.sflag [#allocation4], 1
    %345 = vsyncpa %s344, 1

// kernel: tpu_custom_call.1
$region0: #{tpu_custom_call.1}
  #allocation0 [shape = 'u32[]', space=smem, size = 0x4, offset = 0x4, fixed_abs, tag = 'smem constant byte address 0x4 - core index']
  #allocation1 [shape = 'u32[144,128]{1,0:T(1,128)}', space=vmem, size = 0x12000, scoped, tag = 'internal scratch']
  %s0 = inlined_call_operand.hbm [shape: f32[2,8,32], index: 0, kind: input, shape index: {}]
  %s1 = inlined_call_operand.hbm [shape: f32[32,96], index: 1, kind: input, shape index: {}]
  %s2 = inlined_call_operand.vmem [shape: f32[1,96], index: 2, kind: input, shape index: {}]
  %s3 = inlined_call_operand.hbm [shape: f32[2,8,96], index: 3, kind: output, shape index: {}]
  %s4 = sld [smem:[#allocation0]]
  $region53: #{tpu_custom_call.1} parent=0
    _
  %s6 = ssub.s32 1, %s4
  %s7 = scalar_select 0, %s6, %s4
  $region1: #{tpu_custom_call.1} parent=0
    #allocation2 [shape = 'u8[8192]{0}', space=vmem, size = 0x2000, scoped, tag = 'input window, operand 0']
    #allocation3 [shape = 's32[2]{0}', space=sflag, size = 0x8, scoped, tag = 'scoped memory for tpu_custom_call.1']
    #allocation4 [shape = 's32[2]{0}', space=sflag, size = 0x8, scoped, tag = 'scoped memory for tpu_custom_call.1']
    #allocation5 [shape = 'u8[16384]{0}', space=vmem, size = 0x4000, scoped, tag = 'input window, operand 1, single buffered']
    #allocation6 [shape = 's32[1]{0}', space=sflag, size = 0x4, scoped, tag = 'scoped memory for tpu_custom_call.1']
    #allocation7 [shape = 'u8[8192]{0}', space=vmem, size = 0x2000, scoped, tag = 'output window, operand 0']
    %8 = vsyncpa [#allocation3], 0
    %s9 = scalar_lea.sflag [#allocation3], 1
    %10 = vsyncpa %s9, 0
    %11 = vsyncpa [#allocation6], 0
    %12 = vsyncpa [#allocation4], 0
    %s13 = scalar_lea.sflag [#allocation4], 1
    %14 = vsyncpa %s13, 0
    loop: start=0, step=1, limit=4
    $region2: #{tpu_custom_call.1} parent=1 // loop_pre_header
      _
    $region3: #{tpu_custom_call.1} parent=1 // loop_header
      %s16 = sphi 0, %s20
      %p17 = scmp.ge.s32.totalorder %s16, 4
      %s23 = sphi 0, %s35
      %s24 = sphi 0, %s31
      %s25 = sphi 0, %s23
      %s26 = sphi 0, %s24
      %s27 = sphi 0, %s25
      %s28 = sphi 0, %s26
      %s40 = sphi 0, %s42
      %s43 = sphi 0, %s40
      %s44 = sphi 0, %s43
      %s60 = sphi 0, %s44
      %s64 = sphi 0, %s64
      %s66 = sphi 0, %s64
      %s67 = sphi 0, %s66
      %s81 = sphi 0, %s67
      %s85 = sphi 0, %s85
      %s87 = sphi 0, %s85
      %s88 = sphi 0, %s87
      %s102 = sphi 0, %s88
      %s110 = sphi 0, %s112
      %s113 = sphi 0, %s110
      %s114 = sphi 0, %s113
      %s130 = sphi 0, %s114
    $region4: #{tpu_custom_call.1} parent=1 // loop_header_branch
      %19 = sbr.rel (%p17) target = $region8
    $region5: #{tpu_custom_call.1} parent=1 // loop_body
      %s21 = ssub.s32 %s16, 1
      %s22 = ssub.s32 %s16, 2
      %s29 = sadd.s32 1, %s24
      %p30 = scmp.ge.s32.totalorder %s29, 1
      %s31 = scalar_select %p30, 0, %s29
      %s32 = sadd.s32 1, %s23
      %s33 = scalar_select %p30, %s32, %s23
      %p34 = scmp.ge.s32.totalorder %s33, 2
      %s35 = scalar_select %p34, 0, %s33
      %s36 = ssub.s32 %s23, %s35
      %s37 = ssub.s32 %s24, %s31
      %s38 = sor.u32 %s36, %s37
      %p39 = scmp.eq.s32.totalorder %s38, 0
      %s41 = sadd.s32 %s40, 1
      %s42 = scalar_select %p39, %s40, %s41
      %p45 = pneg %p39
      %p46 = scmp.eq.s32.totalorder %s16, 1
      %p47 = por %p45, %p46
      %p48 = scmp.ne.s32.totalorder %s40, %s43
      %p49 = scmp.eq.s32.totalorder %s16, 0
      %p50 = por %p48, %p49
      %p51 = scmp.ne.s32.totalorder %s40, %s43
      %p52 = scmp.eq.s32.totalorder %s21, 1
      %p53 = por %p51, %p52
      %p54 = scmp.ne.s32.totalorder %s43, %s44
      %p55 = scmp.eq.s32.totalorder %s21, 0
      %p56 = por %p54, %p55
      %p57 = scmp.ne.s32.totalorder %s43, %s44
      %p58 = scmp.eq.s32.totalorder %s22, 1
      %p59 = por %p57, %p58
      %p61 = scmp.ne.s32.totalorder %s44, %s60
      %p62 = scmp.eq.s32.totalorder %s22, 0
      %p63 = por %p61, %p62
      %s65 = sadd.s32 %s64, 1
      %p68 = scmp.eq.s32.totalorder %s16, 1
      %p69 = scmp.ne.s32.totalorder %s64, %s66
      %p70 = scmp.eq.s32.totalorder %s16, 0
      %p71 = por %p69, %p70
      %p72 = scmp.ne.s32.totalorder %s64, %s66
      %p73 = scmp.eq.s32.totalorder %s21, 1
      %p74 = por %p72, %p73
      %p75 = scmp.ne.s32.totalorder %s66, %s67
      %p76 = scmp.eq.s32.totalorder %s21, 0
      %p77 = por %p75, %p76
      %p78 = scmp.ne.s32.totalorder %s66, %s67
      %p79 = scmp.eq.s32.totalorder %s22, 1
      %p80 = por %p78, %p79
      %p82 = scmp.ne.s32.totalorder %s67, %s81
      %p83 = scmp.eq.s32.totalorder %s22, 0
      %p84 = por %p82, %p83
      %s86 = sadd.s32 %s85, 1
      %p89 = scmp.eq.s32.totalorder %s16, 1
      %p90 = scmp.ne.s32.totalorder %s85, %s87
      %p91 = scmp.eq.s32.totalorder %s16, 0
      %p92 = por %p90, %p91
      %p93 = scmp.ne.s32.totalorder %s85, %s87
      %p94 = scmp.eq.s32.totalorder %s21, 1
      %p95 = por %p93, %p94
      %p96 = scmp.ne.s32.totalorder %s87, %s88
      %p97 = scmp.eq.s32.totalorder %s21, 0
      %p98 = por %p96, %p97
      %p99 = scmp.ne.s32.totalorder %s87, %s88
      %p100 = scmp.eq.s32.totalorder %s22, 1
      %p101 = por %p99, %p100
      %p103 = scmp.ne.s32.totalorder %s88, %s102
      %p104 = scmp.eq.s32.totalorder %s22, 0
      %p105 = por %p103, %p104
      %s106 = ssub.s32 %s23, %s35
      %s107 = ssub.s32 %s24, %s31
      %s108 = sor.u32 %s106, %s107
      %p109 = scmp.eq.s32.totalorder %s108, 0
      %s111 = sadd.s32 %s110, 1
      %s112 = scalar_select %p109, %s110, %s111
      %p115 = pneg %p109
      %p116 = scmp.eq.s32.totalorder %s16, 1
      %p117 = por %p115, %p116
      %p118 = scmp.ne.s32.totalorder %s110, %s113
      %p119 = scmp.eq.s32.totalorder %s16, 0
      %p120 = por %p118, %p119
      %p121 = scmp.ne.s32.totalorder %s110, %s113
      %p122 = scmp.eq.s32.totalorder %s21, 1
      %p123 = por %p121, %p122
      %p124 = scmp.ne.s32.totalorder %s113, %s114
      %p125 = scmp.eq.s32.totalorder %s21, 0
      %p126 = por %p124, %p125
      %p127 = scmp.ne.s32.totalorder %s113, %s114
      %p128 = scmp.eq.s32.totalorder %s22, 1
      %p129 = por %p127, %p128
      %p131 = scmp.ne.s32.totalorder %s114, %s130
      %p132 = scmp.eq.s32.totalorder %s22, 0
      %p133 = por %p131, %p132
      %p134 = scmp.le.s32.totalorder 1, %s16
      %p135 = scmp.lt.s32.totalorder %s16, 3
      %p136 = pnand %p134, %p135
      %p137 = pneg %p136
      // Predicated region
      $region9: #{tpu_custom_call.1} parent=5 // pred_check
        _
      $region10: #{tpu_custom_call.1} parent=5 // pred_check_branch
        %139 = sbr.rel (%p136) target = $region12
      $region11: #{tpu_custom_call.1} parent=5 // pred_region
        %s140 = ssub.s32 %s16, 1
        // Predicated region
        $region13: #{tpu_custom_call.1} parent=11 // pred_check
          %p141 = pneg %p77
        $region14: #{tpu_custom_call.1} parent=11 // pred_check_branch
          %143 = sbr.rel (%p141) target = $region16
        $region15: #{tpu_custom_call.1} parent=11 // pred_region
          %s145 = ssub.s32 512, 512
          %146 = vsyncadd [#allocation6], %s145
          %s147 = sshll.u32 [#allocation5], 4
          %s148 = int_to_ptr.vmem [resolvable:$true] %s147
          %153 = dma.hbm_to_vmem [thread:$0]  %s1, 512, %s148, [#allocation6], 128, 128, 8
        $region16: #{tpu_custom_call.1} parent=11 // pred_fallthru
          _
        // Predicated region
        $region17: #{tpu_custom_call.1} parent=11 // pred_check
          %p154 = pneg %p98
        $region18: #{tpu_custom_call.1} parent=11 // pred_check_branch
          %156 = sbr.rel (%p154) target = $region20
        $region19: #{tpu_custom_call.1} parent=11 // pred_region
          _
        $region20: #{tpu_custom_call.1} parent=11 // pred_fallthru
          _
      $region12: #{tpu_custom_call.1} parent=5 // pred_fallthru
        _
      %p157 = scmp.lt.s32.totalorder %s16, 2
      // Predicated region
      $region21: #{tpu_custom_call.1} parent=5 // pred_check
        %p158 = pneg %p157
      $region22: #{tpu_custom_call.1} parent=5 // pred_check_branch
        %160 = sbr.rel (%p158) target = $region24
      $region23: #{tpu_custom_call.1} parent=5 // pred_region
        // Predicated region
        $region25: #{tpu_custom_call.1} parent=23 // pred_check
          %p161 = pneg %p50
        $region26: #{tpu_custom_call.1} parent=23 // pred_check_branch
          %163 = sbr.rel (%p161) target = $region28
        $region27: #{tpu_custom_call.1} parent=23 // pred_region
          %s164 = sand.u32 %s40, 1
          %s165 = scalar_lea.sflag [#allocation3], %s164
          %s166 = sand.u32 %s40, 1
          %s167 = smul.addr %s166, 8
          %s168 = scalar_lea.vmem [#allocation2], %s167
          %s170 = ssub.s32 128, 128
          %171 = vsyncadd %s165, %s170
          %s172 = sadd.s32 %s24, %s23
          %s173 = smul.addr %s172, 128
          %s174 = scalar_lea.hbm %s0, %s173
          %s176 = sshll.u32 %s168, 4
          %s177 = int_to_ptr.vmem [resolvable:$true] %s176
          %179 = dma.hbm_to_vmem [thread:$0]  %s174, 128, %s177, %s165
        $region28: #{tpu_custom_call.1} parent=23 // pred_fallthru
          _
      $region24: #{tpu_custom_call.1} parent=5 // pred_fallthru
        _
      %p180 = scmp.le.s32.totalorder 1, %s16
      %p181 = scmp.lt.s32.totalorder %s16, 3
      %p182 = pnand %p180, %p181
      %p183 = pneg %p182
      // Predicated region
      $region29: #{tpu_custom_call.1} parent=5 // pred_check
        _
      $region30: #{tpu_custom_call.1} parent=5 // pred_check_branch
        %185 = sbr.rel (%p182) target = $region32
      $region31: #{tpu_custom_call.1} parent=5 // pred_region
        %s186 = ssub.s32 %s16, 1
        %s187 = sand.u32 %s43, 1
        %s188 = scalar_lea.sflag [#allocation3], %s187
        %s189 = sand.u32 %s43, 1
        %s190 = smul.addr %s189, 8
        %s191 = scalar_lea.vmem [#allocation2], %s190
        // Predicated region
        $region33: #{tpu_custom_call.1} parent=31 // pred_check
          %p192 = pneg %p56
        $region34: #{tpu_custom_call.1} parent=31 // pred_check_branch
          %194 = sbr.rel (%p192) target = $region36
        $region35: #{tpu_custom_call.1} parent=31 // pred_region
          %195 = dma.done %s188, 128
        $region36: #{tpu_custom_call.1} parent=31 // pred_fallthru
          _
        // Predicated region
        $region37: #{tpu_custom_call.1} parent=31 // pred_check
          %p196 = pneg %p77
        $region38: #{tpu_custom_call.1} parent=31 // pred_check_branch
          %198 = sbr.rel (%p196) target = $region40
        $region39: #{tpu_custom_call.1} parent=31 // pred_region
          %199 = dma.done [#allocation6], 512
        $region40: #{tpu_custom_call.1} parent=31 // pred_fallthru
          _
        %s200 = sand.u32 %s43, 1
        %s201 = scalar_lea.sflag [#allocation3], %s200
        %s202 = sand.u32 %s43, 1
        %s203 = smul.addr %s202, 8
        %s204 = scalar_lea.vmem [#allocation2], %s203
        %p205 = pneg %p56
        %p206 = pneg %p53
        %p207 = pneg %p77
        %p208 = pneg %p74
        %p209 = pneg %p98
        %p210 = pneg %p95
        %p211 = pneg %p126
        %p212 = pneg %p123
        %s213 = sand.u32 %s113, 1
        %s214 = scalar_lea.sflag [#allocation4], %s213
        %s215 = sand.u32 %s113, 1
        %s216 = smul.addr %s215, 8
        %s217 = scalar_lea.vmem [#allocation7], %s216
        %v218 = vld [vmem:[%s191] sm:$0xff]
        %v219 = vld [vmem:[#allocation5] sm:$0xff]
        %v220 = vld [vmem:[#allocation5 + $0x8] sm:$0xff]
        %v221 = vld [vmem:[#allocation5 + $0x10] sm:$0xff]
        %v222 = vld [vmem:[#allocation5 + $0x18] sm:$0xff]
        %v223 = vld [vmem:[%s2] sm:$0x1]
        %v225 = vlaneseq
        %v226 = vshrl.u32 %v225, 7
        %v227 = vsub.s32 0, %v226
        %v228 = vrot.slane %v223, %v227
        %vm230 = vcmask 261120
        %v232 = vsel %vm230, %v218, 0
        %234 = vmatprep.subr.mxu0 0.0
        %235 = vmatpush1.msra.mxu0 %v219
        %236 = vmatprep.subr.mxu0 0.0
        %237 = vmatpush1.msra.mxu0 %v220
        %238 = vmatprep.subr.mxu0 0.0
        %239 = vmatpush1.msra.mxu0 %v221
        %240 = vmatprep.subr.mxu0 0.0
        %241 = vmatpush1.msra.mxu0 %v222
        %242 = vmatprep.subr.mxu0 0.0
        %243 = vmatpush1.msra.mxu0 0.0
        %244 = vmatprep.subr.mxu0 0.0
        %245 = vmatpush1.msra.mxu0 0.0
        %246 = vmatprep.subr.mxu0 0.0
        %247 = vmatpush1.msra.mxu0 0.0
        %248 = vmatprep.subr.mxu0 0.0
        %249 = vmatpush1.msra.mxu0 0.0
        %250 = vmatprep.subr.mxu0 0.0
        %251 = vmatpush1.msra.mxu0 0.0
        %252 = vmatprep.subr.mxu0 0.0
        %253 = vmatpush1.msra.mxu0 0.0
        %254 = vmatprep.subr.mxu0 0.0
        %255 = vmatpush1.msra.mxu0 0.0
        %256 = vmatprep.subr.mxu0 0.0
        %257 = vmatpush1.msra.mxu0 0.0
        %258 = vmatprep.subr.mxu0 0.0
        %259 = vmatpush1.msra.mxu0 0.0
        %260 = vmatprep.subr.mxu0 0.0
        %261 = vmatpush1.msra.mxu0 0.0
        %262 = vmatprep.subr.mxu0 0.0
        %263 = vmatpush1.msra.mxu0 0.0
        %264 = vmatprep.subr.mxu0 0.0
        %265 = vmatpush1.msra.mxu0 0.0
        %266 = vmatprep.subr.mxu0 0.0
        %267 = vmatpush1.msra.mxu0 0.0
        %268 = vmatprep.subr.mxu0 0.0
        %269 = vmatpush1.msra.mxu0 0.0
        %270 = vmatprep.subr.mxu0 0.0
        %271 = vmatpush1.msra.mxu0 0.0
        %272 = vmatprep.subr.mxu0 0.0
        %273 = vmatpush1.msra.mxu0 0.0
        %274 = vmatprep.subr.mxu0 0.0
        %275 = vmatpush1.msra.mxu0 0.0
        %276 = vmatprep.subr.mxu0 0.0
        %277 = vmatpush1.msra.mxu0 0.0
        %278 = vmatprep.subr.mxu0 0.0
        %279 = vmatpush1.msra.mxu0 0.0
        %280 = vmatprep.subr.mxu0 0.0
        %281 = vmatpush1.msra.mxu0 0.0
        %282 = vmatprep.subr.mxu0 0.0
        %283 = vmatpush1.msra.mxu0 0.0
        %284 = vmatprep.subr.mxu0 0.0
        %285 = vmatpush1.msra.mxu0 0.0
        %286 = vmatprep.subr.mxu0 0.0
        %287 = vmatpush1.msra.mxu0 0.0
        %288 = vmatprep.subr.mxu0 0.0
        %289 = vmatpush1.msra.mxu0 0.0
        %290 = vmatprep.subr.mxu0 0.0
        %291 = vmatpush1.msra.mxu0 0.0
        %292 = vmatprep.subr.mxu0 0.0
        %293 = vmatpush1.msra.mxu0 0.0
        %294 = vmatprep.subr.mxu0 0.0
        %295 = vmatpush1.msra.mxu0 0.0
        %296 = vmatprep.subr.mxu0 0.0
        %297 = vmatpush1.msra.mxu0 0.0
        %298 = vmatprep.mubr.f32.mxu0 0.0
        %299 = vmatmul.mubr.f32.gmra.mrb[0].mxu0 %v232
        %v300 = vpop.f32.mrb[0].mxu0
        %v301 = vadd.f32 %v228, %v300
        %v302 = vpop.f32.mrb[0].mxu0
        %303 = vdwg.mxu0
        %vm304 = vcmask 785408
        %305 = vst.msk [vmem:[%s217] sm:$0xff] %vm304, %v301
        %s306 = sand.u32 %s113, 1
        %s307 = scalar_lea.sflag [#allocation4], %s306
        %s308 = sand.u32 %s113, 1
        %s309 = smul.addr %s308, 8
        %s310 = scalar_lea.vmem [#allocation7], %s309
        // Predicated region
        $region41: #{tpu_custom_call.1} parent=31 // pred_check
          %p311 = pneg %p123
        $region42: #{tpu_custom_call.1} parent=31 // pred_check_branch
          %313 = sbr.rel (%p311) target = $region44
        $region43: #{tpu_custom_call.1} parent=31 // pred_region
          %s315 = ssub.s32 128, 128
          %316 = vsyncadd %s307, %s315
          %s317 = sadd.s32 %s26, %s25
          %s318 = smul.addr %s317, 128
          %s319 = scalar_lea.hbm %s3, %s318
          %s321 = sshll.u32 %s310, 4
          %s322 = int_to_ptr.vmem [resolvable:$true] %s321
          %324 = dma.vmem_to_hbm [thread:$0]  %s322, 128, %s319, %s307
        $region44: #{tpu_custom_call.1} parent=31 // pred_fallthru
          _
      $region32: #{tpu_custom_call.1} parent=5 // pred_fallthru
        _
      %p325 = scmp.le.s32.totalorder 2, %s16
      // Predicated region
      $region45: #{tpu_custom_call.1} parent=5 // pred_check
        %p326 = pneg %p325
      $region46: #{tpu_custom_call.1} parent=5 // pred_check_branch
        %328 = sbr.rel (%p326) target = $region48
      $region47: #{tpu_custom_call.1} parent=5 // pred_region
        %s329 = ssub.s32 %s16, 2
        // Predicated region
        $region49: #{tpu_custom_call.1} parent=47 // pred_check
          %p330 = pneg %p129
        $region50: #{tpu_custom_call.1} parent=47 // pred_check_branch
          %332 = sbr.rel (%p330) target = $region52
        $region51: #{tpu_custom_call.1} parent=47 // pred_region
          %s333 = sand.u32 %s114, 1
          %s334 = scalar_lea.sflag [#allocation4], %s333
          %s335 = sand.u32 %s114, 1
          %s336 = smul.addr %s335, 8
          %s337 = scalar_lea.vmem [#allocation7], %s336
          %338 = dma.done %s334, 128
        $region52: #{tpu_custom_call.1} parent=47 // pred_fallthru
          _
      $region48: #{tpu_custom_call.1} parent=5 // pred_fallthru
        _
    $region6: #{tpu_custom_call.1} parent=1 // loop_footer
      %s20 = sadd.s32 1, %s16
    $region7: #{tpu_custom_call.1} parent=1 // loop_footer_branch
      %15 = sbr.rel target = $region3
    $region8: #{tpu_custom_call.1} parent=1 // loop_exit
      _
    %339 = vsyncpa [#allocation3], 1
    %s340 = scalar_lea.sflag [#allocation3], 1
    %341 = vsyncpa %s340, 1
    %342 = vsyncpa [#allocation6], 1
    %343 = vsyncpa [#allocation4], 1
    %s344 = scalar_lea.sflag [#allocation4], 1
    %345 = vsyncpa %s344, 1

</llo_original>
